<compile_context>
chip_gen: v6e
topology: v6e:2x2x1
jax: 0.10.0
libtpu: 0.0.40
codegen_flags: <defaults>
</compile_context>

<pallas_src>
import functools

import jax
import jax.numpy as jnp
import numpy as np
from jax.experimental import pallas as pl
from jax.experimental.pallas import tpu as pltpu


LANE_VERTS = 128               # vertices packed per lane-dense row
ROW_WIDTH = LANE_VERTS * 3     # 384 lanes per row (multiple of 128)


def _cdiv(a, b):
    return -(-a // b)


def _round_up(x, m):
    return ((x + m - 1) // m) * m


def _mesh_kernel(scale_ref, pos_ref, scaled_ref, min_ref, max_ref,
                 min_sc, max_sc):
    """Scale a lane-dense vertex tile and fold it into a running min/max.

    scale_ref : SMEM (1,)          f32  -- scalar mesh scale
    pos_ref   : VMEM (TB, 384)     f32  -- 128 vertices * xyz per row
    scaled_ref: VMEM (TB, 384)     f32  -- scaled output tile
    min_ref   : VMEM (1, 1, 384)   f32  -- per-split min (stored at last step)
    max_ref   : VMEM (1, 1, 384)   f32  -- per-split max (stored at last step)
    min_sc    : VMEM (1, 384)      f32  -- running-min scratch accumulator
    max_sc    : VMEM (1, 384)      f32  -- running-max scratch accumulator
    """
    i = pl.program_id(1)

    @pl.when(i == 0)
    def _():
        min_sc[...] = jnp.full_like(min_sc, jnp.inf)
        max_sc[...] = jnp.full_like(max_sc, -jnp.inf)

    scaled = pos_ref[...] * scale_ref[0]
    scaled_ref[...] = scaled

    min_sc[...] = jnp.minimum(min_sc[...], jnp.min(scaled, axis=0, keepdims=True))
    max_sc[...] = jnp.maximum(max_sc[...], jnp.max(scaled, axis=0, keepdims=True))

    @pl.when(i == pl.num_programs(1) - 1)
    def _():
        min_ref[...] = min_sc[...].reshape(1, 1, ROW_WIDTH)
        max_ref[...] = max_sc[...].reshape(1, 1, ROW_WIDTH)


def _vmem_limit_bytes(tile_bytes):
    """Scoped VMEM budget: ~6 tiles worth, capped below physical capacity."""
    try:
        cap = int(pltpu.get_tpu_info().vmem_capacity_bytes) - (16 << 20)
        cap = max(16 << 20, cap)
    except Exception:
        cap = 48 << 20     # safe on v7x (64 MiB physical) and smaller
    return int(min(cap, max(16 << 20, 6 * tile_bytes)))


@functools.partial(jax.jit, static_argnames=("tile_rows", "num_splits"))
def _scale_and_bound_impl(pos, scale_arr, *, tile_rows, num_splits):
    """pos: (N,3) f32, scale_arr: (1,) f32 -> (scaled (N,3), min (3,), max (3,))."""
    n = pos.shape[0]

    rows = max(1, _cdiv(n, LANE_VERTS))          # rows of 128 vertices
    if rows < num_splits * 8:                    # tiny mesh -> single split
        num_splits = 1
    rows_per_split = _cdiv(rows, num_splits)

    # steps-first tiling: bounds padding waste to <8 rows per split.
    steps = _cdiv(rows_per_split, tile_rows)
    tb = _round_up(_cdiv(rows_per_split, steps), 8)
    rows_pad = num_splits * steps * tb
    n_pad = rows_pad * LANE_VERTS
    padded = n_pad > n

    if padded:
        # pad with copies of the first (real) vertex: cannot affect min/max
        # regardless of the sign of `scale`; padded rows are sliced off below.
        pad = jnp.broadcast_to(pos[0], (n_pad - n, 3))
        pos_p = jnp.concatenate([pos, pad], axis=0)
    else:
        pos_p = pos
    pos2d = pos_p.reshape(rows_pad, ROW_WIDTH)   # contiguous reinterpret, free

    tile_bytes = tb * ROW_WIDTH * 4
    vmem_limit = _vmem_limit_bytes(tile_bytes)

    if num_splits > 1:
        # v7x: shard the split axis across the two TensorCores.
        dim_sem = (pltpu.CORE_PARALLEL, pltpu.ARBITRARY)
    else:
        dim_sem = ("arbitrary", "arbitrary")

    # Donate the padded intermediate buffer to the scaled output (shapes and
    # dtypes match); only when padding already forced a fresh copy so no
    # defensive copy is ever inserted for caller-owned inputs.
    io_aliases = {1: 0} if padded else {}

    cost = pl.CostEstimate(
        flops=3 * n_pad * 3,                       # mul + min + max per element
        transcendentals=0,
        bytes_accessed=2 * n_pad * 3 * 4 + 2 * num_splits * ROW_WIDTH * 4,
    )

    scaled2d, mins, maxs = pl.pallas_call(
        _mesh_kernel,
        out_shape=(
            jax.ShapeDtypeStruct((rows_pad, ROW_WIDTH), jnp.float32),
            jax.ShapeDtypeStruct((num_splits, 1, ROW_WIDTH), jnp.float32),
            jax.ShapeDtypeStruct((num_splits, 1, ROW_WIDTH), jnp.float32),
        ),
        grid_spec=pltpu.PrefetchScalarGridSpec(
            num_scalar_prefetch=0,
            grid=(num_splits, steps),
            in_specs=[
                pl.BlockSpec(memory_space=pltpu.MemorySpace.SMEM),        # scale
                pl.BlockSpec((tb, ROW_WIDTH),
                             lambda p, i: (p * steps + i, 0)),            # pos
            ],
            out_specs=[
                pl.BlockSpec((tb, ROW_WIDTH),
                             lambda p, i: (p * steps + i, 0)),            # scaled
                pl.BlockSpec((1, 1, ROW_WIDTH), lambda p, i: (p, 0, 0)),  # min
                pl.BlockSpec((1, 1, ROW_WIDTH), lambda p, i: (p, 0, 0)),  # max
            ],
            scratch_shapes=[
                pltpu.VMEM((1, ROW_WIDTH), jnp.float32),   # running min
                pltpu.VMEM((1, ROW_WIDTH), jnp.float32),   # running max
            ],
        ),
        compiler_params=pltpu.CompilerParams(
            dimension_semantics=dim_sem,
            vmem_limit_bytes=vmem_limit,
        ),
        cost_estimate=cost,
        input_output_aliases=io_aliases,
    )(scale_arr, pos2d)

    if padded:
        scaled = scaled2d.reshape(n_pad, 3)[:n]
    else:
        scaled = scaled2d.reshape(n, 3)

    # fold the 128 lane-positions (and per-core splits) down to (3,)
    bv_min = jnp.min(mins.reshape(num_splits * LANE_VERTS, 3), axis=0)
    bv_max = jnp.max(maxs.reshape(num_splits * LANE_VERTS, 3), axis=0)
    return scaled, bv_min, bv_max


def scale_and_bound(pos, scale, *, tile_rows=4096, num_splits=1):
    """Scale vertices and compute the bounding volume with one fused kernel.

    pos: (N,3) array-like, scale: python float or 0-d array.
    num_splits=2 is only useful on v7x (2 TensorCores per chip).
    Returns (scaled_pos (N,3), bv_min (3,), bv_max (3,)) as device arrays.
    """
    pos = jnp.asarray(pos, dtype=jnp.float32)
    if pos.shape[0] == 0:
        return (jnp.zeros((0, 3), jnp.float32),
                jnp.full((3,), jnp.inf, jnp.float32),
                jnp.full((3,), -jnp.inf, jnp.float32))
    scale_arr = jnp.asarray(scale, dtype=jnp.float32).reshape(1)
    return _scale_and_bound_impl(pos, scale_arr,
                                 tile_rows=int(tile_rows),
                                 num_splits=int(num_splits))


class MeshPallas:
    """JAX/Pallas analogue of diffdope.Mesh (non-textured branch).

    Geometry is supplied directly (no trimesh file I/O).  Attribute semantics
    match the PyTorch module:
      pos         : (N, 3) float32  -- scaled vertex positions
      pos_idx     : (T, 3) int32    -- triangle index list
      vtx_color   : (N, 3) float32  -- per-vertex color in [0, 1]
      vtx_normals : (N, 3) float32
      bounding_volume, dimensions, center_point -- derived from pos
    """

    def __init__(self, vertices, faces, vertex_colors, vertex_normals, scale,
                 *, num_splits=1):
        self.to_process = ["pos", "pos_idx", "vtx_color", "vtx_normals"]

        scaled_pos, bv_min, bv_max = scale_and_bound(
            vertices, scale, num_splits=num_splits
        )

        self.pos = scaled_pos
        self.pos_idx = jnp.asarray(faces, dtype=jnp.int32)
        self.vtx_color = jnp.asarray(vertex_colors, dtype=jnp.float32)
        self.vtx_normals = jnp.asarray(vertex_normals, dtype=jnp.float32)

        # single host transfer for all derived scalars (no per-element syncs)
        stats = np.asarray(jnp.stack([bv_min, bv_max]))   # (2, 3) one D2H copy
        mn, mx = stats[0], stats[1]

        # bounding_volume: [[min_x, min_y, min_z], [max_x, max_y, max_z]]
        self.bounding_volume = [[float(v) for v in mn], [float(v) for v in mx]]
        self.dimensions = [float(mx[i] - mn[i]) for i in range(3)]
        self.center_point = [float((mn[i] + mx[i]) / 2.0) for i in range(3)]
        self.has_textured_map = False
        self._batchsize_set = False

    def set_batchsize(self, batchsize):
        for key in self.to_process:
            val = getattr(self, key)
            if self._batchsize_set:
                val = val[0]
            setattr(self, key, jnp.stack([val] * batchsize, axis=0))
        self._batchsize_set = True

    def forward(self):
        # Pass-through of the arrays in `to_process`, same as the torch module.
        return {k: getattr(self, k) for k in self.to_process}

    def __call__(self):
        return self.forward()


if __name__ == "__main__":
    key = jax.random.PRNGKey(0)
    k_pos, k_col, k_nrm, k_fac = jax.random.split(key, 4)

    SCALE = 2.5

    # --- ragged mesh (N not a multiple of 128): exercises the padding path ---
    N = 200   # vertices
    T = 96    # triangles
    vertices = jax.random.normal(k_pos, (N, 3), dtype=jnp.float32)
    vertex_colors = jax.random.uniform(k_col, (N, 3), dtype=jnp.float32)
    normals_raw = jax.random.normal(k_nrm, (N, 3), dtype=jnp.float32)
    vertex_normals = normals_raw / jnp.linalg.norm(normals_raw, axis=-1, keepdims=True)
    faces = jax.random.randint(k_fac, (T, 3), 0, N, dtype=jnp.int32)

    mesh = MeshPallas(vertices, faces, vertex_colors, vertex_normals, SCALE)
    out = mesh()
    jax.block_until_ready(out)

    ref_pos = vertices * SCALE
    ref_min = ref_pos.min(axis=0)
    ref_max = ref_pos.max(axis=0)
    assert out["pos"].shape == (N, 3)
    assert jnp.allclose(out["pos"], ref_pos, atol=1e-6)
    assert jnp.allclose(jnp.asarray(mesh.bounding_volume[0]), ref_min, atol=1e-6)
    assert jnp.allclose(jnp.asarray(mesh.bounding_volume[1]), ref_max, atol=1e-6)
    assert jnp.allclose(jnp.asarray(mesh.dimensions), ref_max - ref_min, atol=1e-5)

    # --- tile-aligned mesh (N multiple of 128*8): exercises the no-pad path ---
    N2 = 1024
    vertices2 = jax.random.normal(jax.random.PRNGKey(7), (N2, 3), dtype=jnp.float32)
    scaled2, mn2, mx2 = scale_and_bound(vertices2, SCALE)
    jax.block_until_ready((scaled2, mn2, mx2))
    ref2 = vertices2 * SCALE
    assert scaled2.shape == (N2, 3)
    assert jnp.allclose(scaled2, ref2, atol=1e-6)
    assert jnp.allclose(mn2, ref2.min(axis=0), atol=1e-6)
    assert jnp.allclose(mx2, ref2.max(axis=0), atol=1e-6)

    print("KERNEL_OK")
</pallas_src>

<mosaic_0001>
module attributes {stable_mosaic.version = 11 : i64} {
  func.func @_mesh_kernel(%arg0: i32, %arg1: i32, %arg2: memref<1xf32, #tpu.memory_space<smem>>, %arg3: memref<8x384xf32, #tpu.memory_space<vmem>>, %arg4: memref<8x384xf32, #tpu.memory_space<vmem>>, %arg5: memref<1x1x384xf32, #tpu.memory_space<vmem>>, %arg6: memref<1x1x384xf32, #tpu.memory_space<vmem>>, %arg7: memref<1x384xf32, #tpu.memory_space<vmem>>, %arg8: memref<1x384xf32, #tpu.memory_space<vmem>>) attributes {dimension_semantics = [#tpu.dimension_semantics<arbitrary>, #tpu.dimension_semantics<arbitrary>], iteration_bounds = array<i64: 1, 1>, scalar_prefetch = 0 : i64, scratch_operands = 2 : i64, tpu.core_type = #tpu.core_type<tc>, window_params = [{transform_indices = @transform_0, window_bounds = array<i64: 1>}, {transform_indices = @transform_1, window_bounds = array<i64: 8, 384>}, {transform_indices = @transform_2, window_bounds = array<i64: 8, 384>}, {transform_indices = @transform_3, window_bounds = array<i64: 1, 1, 384>}, {transform_indices = @transform_4, window_bounds = array<i64: 1, 1, 384>}]} {
    %c0_i32 = arith.constant 0 : i32
    %0 = arith.cmpi eq, %arg1, %c0_i32 : i32
    %1 = arith.extui %0 : i1 to i32
    %c0_i32_0 = arith.constant 0 : i32
    %2 = arith.cmpi ne, %1, %c0_i32_0 : i32
    scf.if %2 {
      %cst_16 = arith.constant 0x7F800000 : f32
      %21 = vector.broadcast %cst_16 : f32 to vector<1x384xf32>
      %c0_17 = arith.constant 0 : index
      %c0_18 = arith.constant 0 : index
      %22 = vector.load %arg7[%c0_17, %c0_18] : memref<1x384xf32, #tpu.memory_space<vmem>>, vector<1x384xf32>
      tpu.vector_store %arg7[%c0_17, %c0_18], %21 {strides = array<i32>} : memref<1x384xf32, #tpu.memory_space<vmem>>, vector<1x384xf32>,
      %cst_19 = arith.constant 0xFF800000 : f32
      %23 = vector.broadcast %cst_19 : f32 to vector<1x384xf32>
      %c0_20 = arith.constant 0 : index
      %c0_21 = arith.constant 0 : index
      %24 = vector.load %arg8[%c0_20, %c0_21] : memref<1x384xf32, #tpu.memory_space<vmem>>, vector<1x384xf32>
      tpu.vector_store %arg8[%c0_20, %c0_21], %23 {strides = array<i32>} : memref<1x384xf32, #tpu.memory_space<vmem>>, vector<1x384xf32>,
    } else {
    }
    %c0 = arith.constant 0 : index
    %c0_1 = arith.constant 0 : index
    %3 = vector.load %arg3[%c0, %c0_1] : memref<8x384xf32, #tpu.memory_space<vmem>>, vector<8x384xf32>
    %c0_2 = arith.constant 0 : index
    %4 = memref.load %arg2[%c0_2] : memref<1xf32, #tpu.memory_space<smem>>
    %5 = vector.broadcast %4 : f32 to vector<8x384xf32>
    %6 = arith.mulf %3, %5 : vector<8x384xf32>
    %c0_3 = arith.constant 0 : index
    %c0_4 = arith.constant 0 : index
    %7 = vector.load %arg4[%c0_3, %c0_4] : memref<8x384xf32, #tpu.memory_space<vmem>>, vector<8x384xf32>
    tpu.vector_store %arg4[%c0_3, %c0_4], %6 {strides = array<i32>} : memref<8x384xf32, #tpu.memory_space<vmem>>, vector<8x384xf32>,
    %c0_5 = arith.constant 0 : index
    %c0_6 = arith.constant 0 : index
    %8 = vector.load %arg7[%c0_5, %c0_6] : memref<1x384xf32, #tpu.memory_space<vmem>>, vector<1x384xf32>
    %cst = arith.constant dense<0x7F800000> : vector<384xf32>
    %9 = vector.multi_reduction <minimumf>, %6, %cst [0] : vector<8x384xf32> to vector<384xf32>
    %10 = vector.shape_cast %9 : vector<384xf32> to vector<1x384xf32>
    %11 = arith.minimumf %8, %10 : vector<1x384xf32>
    %c0_7 = arith.constant 0 : index
    %c0_8 = arith.constant 0 : index
    %12 = vector.load %arg7[%c0_7, %c0_8] : memref<1x384xf32, #tpu.memory_space<vmem>>, vector<1x384xf32>
    tpu.vector_store %arg7[%c0_7, %c0_8], %11 {strides = array<i32>} : memref<1x384xf32, #tpu.memory_space<vmem>>, vector<1x384xf32>,
    %c0_9 = arith.constant 0 : index
    %c0_10 = arith.constant 0 : index
    %13 = vector.load %arg8[%c0_9, %c0_10] : memref<1x384xf32, #tpu.memory_space<vmem>>, vector<1x384xf32>
    %cst_11 = arith.constant dense<0xFF800000> : vector<384xf32>
    %14 = vector.multi_reduction <maximumf>, %6, %cst_11 [0] : vector<8x384xf32> to vector<384xf32>
    %15 = vector.shape_cast %14 : vector<384xf32> to vector<1x384xf32>
    %16 = arith.maximumf %13, %15 : vector<1x384xf32>
    %c0_12 = arith.constant 0 : index
    %c0_13 = arith.constant 0 : index
    %17 = vector.load %arg8[%c0_12, %c0_13] : memref<1x384xf32, #tpu.memory_space<vmem>>, vector<1x384xf32>
    tpu.vector_store %arg8[%c0_12, %c0_13], %16 {strides = array<i32>} : memref<1x384xf32, #tpu.memory_space<vmem>>, vector<1x384xf32>,
    %c0_i32_14 = arith.constant 0 : i32
    %18 = arith.cmpi eq, %arg1, %c0_i32_14 : i32
    %19 = arith.extui %18 : i1 to i32
    %c0_i32_15 = arith.constant 0 : i32
    %20 = arith.cmpi ne, %19, %c0_i32_15 : i32
    scf.if %20 {
      %c0_16 = arith.constant 0 : index
      %c0_17 = arith.constant 0 : index
      %21 = vector.load %arg7[%c0_16, %c0_17] : memref<1x384xf32, #tpu.memory_space<vmem>>, vector<1x384xf32>
      %22 = vector.shape_cast %21 : vector<1x384xf32> to vector<1x1x384xf32>
      %c0_18 = arith.constant 0 : index
      %c0_19 = arith.constant 0 : index
      %c0_20 = arith.constant 0 : index
      %23 = vector.load %arg5[%c0_18, %c0_19, %c0_20] : memref<1x1x384xf32, #tpu.memory_space<vmem>>, vector<1x1x384xf32>
      tpu.vector_store %arg5[%c0_18, %c0_19, %c0_20], %22 {strides = array<i32>} : memref<1x1x384xf32, #tpu.memory_space<vmem>>, vector<1x1x384xf32>,
      %c0_21 = arith.constant 0 : index
      %c0_22 = arith.constant 0 : index
      %24 = vector.load %arg8[%c0_21, %c0_22] : memref<1x384xf32, #tpu.memory_space<vmem>>, vector<1x384xf32>
      %25 = vector.shape_cast %24 : vector<1x384xf32> to vector<1x1x384xf32>
      %c0_23 = arith.constant 0 : index
      %c0_24 = arith.constant 0 : index
      %c0_25 = arith.constant 0 : index
      %26 = vector.load %arg6[%c0_23, %c0_24, %c0_25] : memref<1x1x384xf32, #tpu.memory_space<vmem>>, vector<1x1x384xf32>
      tpu.vector_store %arg6[%c0_23, %c0_24, %c0_25], %25 {strides = array<i32>} : memref<1x1x384xf32, #tpu.memory_space<vmem>>, vector<1x1x384xf32>,
    } else {
    }
    return
  }
  func.func @transform_0(%arg0: i32, %arg1: i32) -> i32 {
    %c0_i32 = arith.constant 0 : i32
    %c0_i32_0 = arith.constant 0 : i32
    return %c0_i32 : i32
  }
  func.func @transform_1(%arg0: i32, %arg1: i32) -> (i32, i32) {
    %c1_i32 = arith.constant 1 : i32
    %0 = arith.muli %arg0, %c1_i32 : i32
    %1 = arith.addi %0, %arg1 : i32
    %c0_i32 = arith.constant 0 : i32
    %c0_i32_0 = arith.constant 0 : i32
    return %1, %c0_i32 : i32, i32
  }
  func.func @transform_2(%arg0: i32, %arg1: i32) -> (i32, i32) {
    %c1_i32 = arith.constant 1 : i32
    %0 = arith.muli %arg0, %c1_i32 : i32
    %1 = arith.addi %0, %arg1 : i32
    %c0_i32 = arith.constant 0 : i32
    %c0_i32_0 = arith.constant 0 : i32
    return %1, %c0_i32 : i32, i32
  }
  func.func @transform_3(%arg0: i32, %arg1: i32) -> (i32, i32, i32) {
    %c0_i32 = arith.constant 0 : i32
    %c0_i32_0 = arith.constant 0 : i32
    %c0_i32_1 = arith.constant 0 : i32
    return %arg0, %c0_i32, %c0_i32_0 : i32, i32, i32
  }
  func.func @transform_4(%arg0: i32, %arg1: i32) -> (i32, i32, i32) {
    %c0_i32 = arith.constant 0 : i32
    %c0_i32_0 = arith.constant 0 : i32
    %c0_i32_1 = arith.constant 0 : i32
    return %arg0, %c0_i32, %c0_i32_0 : i32, i32, i32
  }
}

</mosaic_0001>

<llo_original>
// kernel: _scale_and_bound_impl.1
$region0: #{_scale_and_bound_impl.1}
  #allocation0 [shape = 'u32[]', space=smem, size = 0x4, offset = 0x4, fixed_abs, tag = 'smem constant byte address 0x4 - core index']
  #allocation1 [shape = 'u32[144,128]{1,0:T(1,128)}', space=vmem, size = 0x12000, scoped, tag = 'internal scratch']
  #allocation2 [shape = 'f32[1,384]{1,0:T(1,128)}', space=vmem, size = 0x600, scoped, tag = 'scratch operand']
  #allocation3 [shape = 'f32[1,384]{1,0:T(1,128)}', space=vmem, size = 0x600, scoped, tag = 'scratch operand']
  #allocation4 [shape = 'f32[1]{0:T(128)S(6)}', space=smem, size = 0x200, scoped, tag = 'scoped memory for _scale_and_bound_impl.1']
  %s0 = inlined_call_operand.<no memory space> [shape: f32[1], index: 0, kind: input, shape index: {}]
  %s1 = inlined_call_operand.vmem [shape: f32[8,384], index: 1, kind: input, shape index: {}, may-alias: {1,2}]
  %s2 = inlined_call_operand.vmem [shape: f32[8,384], index: 2, kind: output, shape index: {0}, may-alias: {1,2}]
  %s3 = inlined_call_operand.vmem [shape: f32[1,1,384], index: 3, kind: output, shape index: {1}]
  %s4 = inlined_call_operand.vmem [shape: f32[1,1,384], index: 4, kind: output, shape index: {2}]
  %5 = xla_tuple %s2, %s3, %s4
  %s6 = sld [smem:[#allocation0]]
  $region42: #{_scale_and_bound_impl.1} parent=0
    _
  %s8 = ssub.s32 1, %s6
  %s9 = scalar_select 0, %s8, %s6
  %10 = sst [smem:[#allocation4]] %s0
  // Predicated region
  $region2: #{_scale_and_bound_impl.1} parent=0 // pred_check
    _
  $region3: #{_scale_and_bound_impl.1} parent=0 // pred_check_branch
    %12 = sbr.rel (0) target = $region5
  $region4: #{_scale_and_bound_impl.1} parent=0 // pred_region
    _
  $region5: #{_scale_and_bound_impl.1} parent=0 // pred_fallthru
    _
  // Predicated region
  $region6: #{_scale_and_bound_impl.1} parent=0 // pred_check
    _
  $region7: #{_scale_and_bound_impl.1} parent=0 // pred_check_branch
    %14 = sbr.rel (0) target = $region9
  $region8: #{_scale_and_bound_impl.1} parent=0 // pred_region
    %s15 = sadd.s32 0, 0
    %p16 = scmp.lt.s32.totalorder %s15, 0
    %s17 = scalar_select %p16, %s15, 0
    %s18 = smul.addr %s17, 3
    %s19 = smul.addr %s18, 8
    %s20 = scalar_lea.vmem %s1, %s19
    %s21 = sadd.s32 0, 0
  $region9: #{_scale_and_bound_impl.1} parent=0 // pred_fallthru
    _
  %s22 = sadd.s32 0, 0
  %p23 = scmp.lt.s32.totalorder %s22, 0
  %s24 = scalar_select %p23, %s22, 0
  %s25 = smul.addr %s24, 3
  %s26 = smul.addr %s25, 8
  %s27 = scalar_lea.vmem %s1, %s26
  %s28 = sadd.s32 0, 0
  %p29 = scmp.lt.s32.totalorder %s28, 0
  %s30 = scalar_select %p29, %s28, 0
  %s31 = smul.addr %s30, 3
  %s32 = smul.addr %s31, 8
  %s33 = scalar_lea.vmem %s2, %s32
  %s34 = sadd.s32 0, 0
  %p35 = scmp.lt.s32.totalorder %s34, 0
  %s36 = scalar_select %p35, %s34, 0
  %s37 = smul.addr %s36, 3
  %s38 = smul.addr %s37, 8
  %s39 = scalar_lea.vmem %s1, %s38
  %s40 = sadd.s32 0, 0
  %s41 = sadd.s32 0, 0
  %p42 = scmp.lt.s32.totalorder %s41, 0
  %s43 = scalar_select %p42, %s41, 0
  %s44 = smul.addr %s43, 3
  %s45 = smul.addr %s44, 8
  %s46 = scalar_lea.vmem %s2, %s45
  %s47 = sadd.s32 0, 0
  %p48 = scmp.eq.s32.totalorder 0, 0
  // Predicated region
  $region10: #{_scale_and_bound_impl.1} parent=0 // pred_check
    %p49 = pneg %p48
  $region11: #{_scale_and_bound_impl.1} parent=0 // pred_check_branch
    %51 = sbr.rel (%p49) target = $region13
  $region12: #{_scale_and_bound_impl.1} parent=0 // pred_region
    %v52 = vlaneseq
    %vm53 = vcmp.ge.s32.totalorder %v52, 0
    %vm54 = vcmp.lt.s32.totalorder %v52, 384
    %vm55 = vmand %vm53, %vm54
    %56 = vst.msk [vmem:[#allocation2] sm:$0x7] %vm55, inf
    %57 = vst.msk [vmem:[#allocation3] sm:$0x7] %vm55, -inf
  $region13: #{_scale_and_bound_impl.1} parent=0 // pred_fallthru
    _
  %v58 = vld [vmem:[%s39] sm:$0xff]
  %v59 = vld [vmem:[%s39 + $0x8] sm:$0xff]
  %v60 = vld [vmem:[%s39 + $0x10] sm:$0xff]
  %s61 = sld [smem:[#allocation4]]
  %v62 = vstv %s61
  %v63 = vmul.f32 %v58, %v62
  %v64 = vmul.f32 %v59, %v62
  %v65 = vmul.f32 %v60, %v62
  %66 = vst [vmem:[%s46] sm:$0xff] %v63
  %67 = vst [vmem:[%s46 + $0x8] sm:$0xff] %v64
  %68 = vst [vmem:[%s46 + $0x10] sm:$0xff] %v65
  %v69 = vld [vmem:[#allocation2] sm:$0x7]
  %v70 = vrot.slane %v63, 4
  %v71 = vmin.f32 %v63, %v70
  %v72 = vrot.slane %v71, 2
  %v73 = vmin.f32 %v71, %v72
  %v74 = vrot.slane %v73, 1
  %v75 = vmin.f32 %v73, %v74
  %v76 = vrot.slane %v64, 4
  %v77 = vmin.f32 %v64, %v76
  %v78 = vrot.slane %v77, 2
  %v79 = vmin.f32 %v77, %v78
  %v80 = vrot.slane %v79, 1
  %v81 = vmin.f32 %v79, %v80
  %v82 = vrot.slane %v65, 4
  %v83 = vmin.f32 %v65, %v82
  %v84 = vrot.slane %v83, 2
  %v85 = vmin.f32 %v83, %v84
  %v86 = vrot.slane %v85, 1
  %v87 = vmin.f32 %v85, %v86
  %v91 = vcombine.low %v75, %v81
  %v93 = vunpack.c.l.s4 1966171168
  %v94 = vunpack.c.0.s8 %v93
  %v95 = vlaneseq
  %v96 = vshrl.u32 %v95, 7
  %v97 = vsub.s32 %v94, %v96
  %v98 = vrot.slane %v91, %v97
  %v100 = vunpack.c.l.s4 1966171168
  %v101 = vunpack.c.0.s8 %v100
  %v102 = vlaneseq
  %v103 = vshrl.u32 %v102, 7
  %v104 = vsub.s32 %v101, %v103
  %v105 = vrot.slane %v87, %v104
  %v106 = vcombine.low %v98, %v105
  %v108 = vunpack.c.l.s4 1966171168
  %v109 = vunpack.c.0.s8 %v108
  %v110 = vlaneseq
  %v111 = vshrl.u32 %v110, 7
  %v112 = vsub.s32 %v109, %v111
  %v113 = vrot.slane %v106, %v112
  %v115 = vmin.f32 %v69, %v113
  %v116 = vlaneseq
  %vm117 = vcmp.ge.s32.totalorder %v116, 0
  %vm118 = vcmp.lt.s32.totalorder %v116, 384
  %vm119 = vmand %vm117, %vm118
  %120 = vst.msk [vmem:[#allocation2] sm:$0x7] %vm119, %v115
  %v121 = vld [vmem:[#allocation3] sm:$0x7]
  %v122 = vrot.slane %v63, 4
  %v123 = vmax.f32 %v63, %v122
  %v124 = vrot.slane %v123, 2
  %v125 = vmax.f32 %v123, %v124
  %v126 = vrot.slane %v125, 1
  %v127 = vmax.f32 %v125, %v126
  %v128 = vrot.slane %v64, 4
  %v129 = vmax.f32 %v64, %v128
  %v130 = vrot.slane %v129, 2
  %v131 = vmax.f32 %v129, %v130
  %v132 = vrot.slane %v131, 1
  %v133 = vmax.f32 %v131, %v132
  %v134 = vrot.slane %v65, 4
  %v135 = vmax.f32 %v65, %v134
  %v136 = vrot.slane %v135, 2
  %v137 = vmax.f32 %v135, %v136
  %v138 = vrot.slane %v137, 1
  %v139 = vmax.f32 %v137, %v138
  %v143 = vcombine.low %v127, %v133
  %v145 = vunpack.c.l.s4 1966171168
  %v146 = vunpack.c.0.s8 %v145
  %v147 = vlaneseq
  %v148 = vshrl.u32 %v147, 7
  %v149 = vsub.s32 %v146, %v148
  %v150 = vrot.slane %v143, %v149
  %v152 = vunpack.c.l.s4 1966171168
  %v153 = vunpack.c.0.s8 %v152
  %v154 = vlaneseq
  %v155 = vshrl.u32 %v154, 7
  %v156 = vsub.s32 %v153, %v155
  %v157 = vrot.slane %v139, %v156
  %v158 = vcombine.low %v150, %v157
  %v160 = vunpack.c.l.s4 1966171168
  %v161 = vunpack.c.0.s8 %v160
  %v162 = vlaneseq
  %v163 = vshrl.u32 %v162, 7
  %v164 = vsub.s32 %v161, %v163
  %v165 = vrot.slane %v158, %v164
  %v167 = vmax.f32 %v121, %v165
  %168 = vst.msk [vmem:[#allocation3] sm:$0x7] %vm119, %v167
  // Predicated region
  $region14: #{_scale_and_bound_impl.1} parent=0 // pred_check
    %p169 = pneg %p48
  $region15: #{_scale_and_bound_impl.1} parent=0 // pred_check_branch
    %171 = sbr.rel (%p169) target = $region17
  $region16: #{_scale_and_bound_impl.1} parent=0 // pred_region
    %v172 = vld [vmem:[#allocation2] sm:$0x7]
    %173 = vst.msk [vmem:[%s3] sm:$0x7] %vm119, %v172
    %v174 = vld [vmem:[#allocation3] sm:$0x7]
    %175 = vst.msk [vmem:[%s4] sm:$0x7] %vm119, %v174
  $region17: #{_scale_and_bound_impl.1} parent=0 // pred_fallthru
    _
  %s176 = sadd.s32 0, 0
  %p177 = scmp.lt.s32.totalorder %s176, 0
  %s178 = scalar_select %p177, %s176, 0
  %s179 = smul.addr %s178, 3
  %s180 = smul.addr %s179, 8
  %s181 = scalar_lea.vmem %s2, %s180
  // Predicated region
  $region18: #{_scale_and_bound_impl.1} parent=0 // pred_check
    _
  $region19: #{_scale_and_bound_impl.1} parent=0 // pred_check_branch
    %183 = sbr.rel (0) target = $region21
  $region20: #{_scale_and_bound_impl.1} parent=0 // pred_region
    %s184 = sadd.s32 0, 0
  $region21: #{_scale_and_bound_impl.1} parent=0 // pred_fallthru
    _
  // Predicated region
  $region22: #{_scale_and_bound_impl.1} parent=0 // pred_check
    _
  $region23: #{_scale_and_bound_impl.1} parent=0 // pred_check_branch
    %186 = sbr.rel (0) target = $region25
  $region24: #{_scale_and_bound_impl.1} parent=0 // pred_region
    _
  $region25: #{_scale_and_bound_impl.1} parent=0 // pred_fallthru
    _
  // Predicated region
  $region26: #{_scale_and_bound_impl.1} parent=0 // pred_check
    _
  $region27: #{_scale_and_bound_impl.1} parent=0 // pred_check_branch
    %188 = sbr.rel (0) target = $region29
  $region28: #{_scale_and_bound_impl.1} parent=0 // pred_region
    _
  $region29: #{_scale_and_bound_impl.1} parent=0 // pred_fallthru
    _
  // Predicated region
  $region30: #{_scale_and_bound_impl.1} parent=0 // pred_check
    _
  $region31: #{_scale_and_bound_impl.1} parent=0 // pred_check_branch
    %190 = sbr.rel (0) target = $region33
  $region32: #{_scale_and_bound_impl.1} parent=0 // pred_region
    %s191 = sadd.s32 0, 0
    %p192 = scmp.lt.s32.totalorder %s191, 0
    %s193 = scalar_select %p192, %s191, 0
    %s194 = smul.addr %s193, 3
    %s195 = smul.addr %s194, 8
    %s196 = scalar_lea.vmem %s2, %s195
  $region33: #{_scale_and_bound_impl.1} parent=0 // pred_fallthru
    _
  // Predicated region
  $region34: #{_scale_and_bound_impl.1} parent=0 // pred_check
    _
  $region35: #{_scale_and_bound_impl.1} parent=0 // pred_check_branch
    %198 = sbr.rel (0) target = $region37
  $region36: #{_scale_and_bound_impl.1} parent=0 // pred_region
    _
  $region37: #{_scale_and_bound_impl.1} parent=0 // pred_fallthru
    _
  // Predicated region
  $region38: #{_scale_and_bound_impl.1} parent=0 // pred_check
    _
  $region39: #{_scale_and_bound_impl.1} parent=0 // pred_check_branch
    %200 = sbr.rel (0) target = $region41
  $region40: #{_scale_and_bound_impl.1} parent=0 // pred_region
    _
  $region41: #{_scale_and_bound_impl.1} parent=0 // pred_fallthru
    _

</llo_original>
